<compile_context>
chip_gen: v7x
topology: tpu7x:2x2x1
jax: 0.10.0
libtpu: 0.0.40
codegen_flags: <defaults>
</compile_context>

<pallas_src>
import functools

import jax
import jax.numpy as jnp
from jax.experimental import pallas as pl
from jax.experimental.pallas import tpu as pltpu

BN_EPS = 1e-5
LN_EPS = 1e-5


def _round_up(n, m):
    return ((n + m - 1) // m) * m


def _linear_resblock_kernel(
    x_ref,      # [B, Din]         f32
    w1_ref,     # [Din, Din]       bf16
    ws_ref,     # [Din, Dout_pad]  bf16   shortcut weight (zero-padded columns)
    w2_ref,     # [Din, Dout_pad]  bf16   main-branch weight (zero-padded columns)
    pin_ref,    # [2, Din]         f32    rows: bn_gamma, bn_beta
    pout_ref,   # [3, Dout_pad]    f32    rows: (b2 + bs), ln_gamma, ln_beta
    o_ref,      # [B, Dout_pad]    f32
    *,
    dout,       # true (unpadded) output feature count, for LayerNorm stats
):
    x = x_ref[...]                              # f32 activations
    pin = pin_ref[...]
    pout = pout_ref[...]
    bn_g, bn_b = pin[0:1], pin[1:2]
    b_fused, ln_g, ln_b = pout[0:1], pout[1:2], pout[2:3]

    x_bf = x.astype(jnp.bfloat16)

    # ---- block_nonlinear: Linear(in, in) (bf16 MXU, f32 accumulate) ----
    # b1 omitted: training-mode BN subtracts the batch mean, so it cancels exactly.
    h = jnp.dot(x_bf, w1_ref[...], preferred_element_type=jnp.float32)

    # ---- BatchNorm1d (training mode, biased variance): one-pass stats, folded ----
    inv_b = 1.0 / x.shape[0]
    mu = jnp.sum(h, axis=0, keepdims=True) * inv_b
    msq = jnp.sum(h * h, axis=0, keepdims=True) * inv_b
    var = jnp.maximum(msq - mu * mu, 0.0)            # clamp f32 cancellation
    scale = bn_g * jax.lax.rsqrt(var + BN_EPS)       # rsqrt -> EUP slot
    shift = bn_b - mu * scale
    h = jnp.maximum(h * scale + shift, 0.0)          # BN + ReLU, f32 VPU

    # ---- Shortcut + main branch: two K=Din MXU pushes into one f32 accumulator ----
    z = jnp.dot(x_bf, ws_ref[...], preferred_element_type=jnp.float32)
    z = z + jnp.dot(h.astype(jnp.bfloat16), w2_ref[...],
                    preferred_element_type=jnp.float32)
    z = z + b_fused                                  # (b2 + bs), zero in padded lanes

    # ---- LayerNorm over the TRUE dout features ----
    # Padded lanes of z are exactly zero (zero weight columns + zero bias), so the
    # lane-axis sums equal the sums over the true features; divide by `dout`.
    inv_d = 1.0 / dout
    lmu = jnp.sum(z, axis=-1, keepdims=True) * inv_d
    lmsq = jnp.sum(z * z, axis=-1, keepdims=True) * inv_d
    lvar = jnp.maximum(lmsq - lmu * lmu, 0.0)
    zn = (z - lmu) * jax.lax.rsqrt(lvar + LN_EPS)

    # Padded lanes: ln_g = ln_b = 0 there, so the padded output columns are 0.
    o_ref[...] = zn * ln_g + ln_b


def prepare_params(params):
    """One-time parameter prep (bf16 weight casts, lane padding, bias packing).

    Hoisted out of the per-call path so the per-forward HBM traffic is only the
    prepared tensors, not repeated cast/concat passes over the weights.
    """
    din = params["w1"].shape[0]
    dout = params["w2"].shape[1]
    dout_pad = _round_up(max(dout, 128), 128)
    pad = dout_pad - dout

    def pad_cols(a):
        return jnp.pad(a, ((0, 0), (0, pad))) if pad else a

    prep = {
        "w1": params["w1"].astype(jnp.bfloat16),                       # [Din, Din]
        "ws": pad_cols(params["ws"]).astype(jnp.bfloat16),             # [Din, Dout_pad]
        "w2": pad_cols(params["w2"]).astype(jnp.bfloat16),             # [Din, Dout_pad]
        # b1 intentionally dropped (cancelled by training-mode BN mean subtraction).
        "pin": jnp.concatenate(
            [params["bn_gamma"], params["bn_beta"]], axis=0),          # [2, Din]
        "pout": jnp.concatenate(
            [pad_cols(params["b2"] + params["bs"]),
             pad_cols(params["ln_gamma"]),
             pad_cols(params["ln_beta"])], axis=0),                    # [3, Dout_pad]
        "din": din,
        "dout": dout,
        "dout_pad": dout_pad,
    }
    return prep


def linear_resblock(x, prep):
    """x: [B, Din] float32. prep: output of prepare_params()."""
    B, din = x.shape
    assert din == prep["din"]
    dout, dout_pad = prep["dout"], prep["dout_pad"]

    args = (x, prep["w1"], prep["ws"], prep["w2"], prep["pin"], prep["pout"])

    def full_spec(a):
        # Whole-array block: everything resident in VMEM (small problem sizes).
        return pl.BlockSpec(a.shape, lambda: (0,) * a.ndim)

    # Generation-aware scoped-VMEM limit: 1x footprint + fixed headroom, capped below
    # the physical VMEM of the current chip (128 MiB v5e/v6e, 64 MiB v7x).
    nbytes = sum(int(a.size) * a.dtype.itemsize for a in args) + B * dout_pad * 4
    try:
        cap = int(pltpu.get_tpu_info().vmem_capacity_bytes)
    except Exception:  # pragma: no cover - conservative fallback
        cap = 64 * 1024 * 1024
    headroom = 16 * 1024 * 1024
    vmem_limit = int(min(max(nbytes + headroom, 32 * 1024 * 1024), cap - headroom))

    kernel = functools.partial(_linear_resblock_kernel, dout=dout)

    out = pl.pallas_call(
        kernel,
        out_shape=jax.ShapeDtypeStruct((B, dout_pad), jnp.float32),
        in_specs=[full_spec(a) for a in args],
        out_specs=pl.BlockSpec((B, dout_pad), lambda: (0, 0)),
        compiler_params=pltpu.CompilerParams(vmem_limit_bytes=vmem_limit),
    )(*args)

    return out[:, :dout]


def init_params(key, in_size, out_size):
    """Deterministic synthetic init matching the PyTorch module's parameter shapes."""
    ks = jax.random.split(key, 6)
    scale_in = 1.0 / jnp.sqrt(in_size)

    # PyTorch Linear stores weight as [out, in]; we keep [in, out] (pre-transposed).
    w1 = jax.random.uniform(ks[0], (in_size, in_size), jnp.float32, -scale_in, scale_in)
    b1 = jax.random.uniform(ks[1], (1, in_size), jnp.float32, -scale_in, scale_in)
    w2 = jax.random.uniform(ks[2], (in_size, out_size), jnp.float32, -scale_in, scale_in)
    b2 = jax.random.uniform(ks[3], (1, out_size), jnp.float32, -scale_in, scale_in)
    ws = jax.random.uniform(ks[4], (in_size, out_size), jnp.float32, -scale_in, scale_in)
    bs = jax.random.uniform(ks[5], (1, out_size), jnp.float32, -scale_in, scale_in)

    return {
        "w1": w1, "b1": b1,
        "bn_gamma": jnp.ones((1, in_size), jnp.float32),
        "bn_beta": jnp.zeros((1, in_size), jnp.float32),
        "w2": w2, "b2": b2,
        "ws": ws, "bs": bs,
        "ln_gamma": jnp.ones((1, out_size), jnp.float32),
        "ln_beta": jnp.zeros((1, out_size), jnp.float32),
    }


def _reference(x, p, matmul_dtype=jnp.float32):
    """Pure-JAX reference (training-mode BatchNorm1d), including b1 (which the kernel
    drops as a BN-cancelled no-op). matmul_dtype=bf16 mirrors the kernel's MXU inputs
    (f32 accumulation)."""
    def mm(a, w):
        return jnp.dot(a.astype(matmul_dtype), w.astype(matmul_dtype),
                       preferred_element_type=jnp.float32)

    h = mm(x, p["w1"]) + p["b1"]
    mu = jnp.mean(h, axis=0, keepdims=True)
    var = jnp.mean((h - mu) ** 2, axis=0, keepdims=True)
    h = (h - mu) / jnp.sqrt(var + BN_EPS) * p["bn_gamma"] + p["bn_beta"]
    h = jnp.maximum(h, 0.0)
    y = mm(h, p["w2"]) + p["b2"]
    s = mm(x, p["ws"]) + p["bs"]
    z = y + s
    lmu = jnp.mean(z, axis=-1, keepdims=True)
    lvar = jnp.mean((z - lmu) ** 2, axis=-1, keepdims=True)
    return (z - lmu) / jnp.sqrt(lvar + LN_EPS) * p["ln_gamma"] + p["ln_beta"]


if __name__ == "__main__":
    key = jax.random.PRNGKey(0)
    k_x, k_p = jax.random.split(key)

    B, in_size, out_size = 8, 32, 16
    x = jax.random.normal(k_x, (B, in_size), jnp.float32)
    params = init_params(k_p, in_size, out_size)

    prep = prepare_params(params)                 # one-time weight prep (hoisted)
    out = jax.block_until_ready(linear_resblock(x, prep))

    ref_mixed = _reference(x, params, matmul_dtype=jnp.bfloat16)  # matches kernel precision
    ref_f32 = _reference(x, params, matmul_dtype=jnp.float32)     # exact PyTorch-f32 semantics

    assert out.shape == (B, out_size)
    assert jnp.allclose(out, ref_mixed, atol=5e-3, rtol=5e-3), "mismatch vs mixed-precision reference"
    assert float(jnp.max(jnp.abs(out - ref_f32))) < 0.15, "drifted too far from full-f32 reference"

    print("KERNEL_OK")
</pallas_src>

<mosaic_0001>
module attributes {stable_mosaic.version = 11 : i64} {
  func.func @_linear_resblock_kernel(%arg0: memref<8x32xf32, #tpu.memory_space<vmem>>, %arg1: memref<32x32xbf16, #tpu.memory_space<vmem>>, %arg2: memref<32x128xbf16, #tpu.memory_space<vmem>>, %arg3: memref<32x128xbf16, #tpu.memory_space<vmem>>, %arg4: memref<2x32xf32, #tpu.memory_space<vmem>>, %arg5: memref<3x128xf32, #tpu.memory_space<vmem>>, %arg6: memref<8x128xf32, #tpu.memory_space<vmem>>) attributes {dimension_semantics = [], scalar_prefetch = 0 : i64, scratch_operands = 0 : i64, tpu.core_type = #tpu.core_type<tc>} {
    %c0 = arith.constant 0 : index
    %c0_0 = arith.constant 0 : index
    %0 = vector.load %arg0[%c0, %c0_0] : memref<8x32xf32, #tpu.memory_space<vmem>>, vector<8x32xf32>
    %c0_1 = arith.constant 0 : index
    %c0_2 = arith.constant 0 : index
    %1 = vector.load %arg4[%c0_1, %c0_2] : memref<2x32xf32, #tpu.memory_space<vmem>>, vector<2x32xf32>
    %c0_3 = arith.constant 0 : index
    %c0_4 = arith.constant 0 : index
    %2 = vector.load %arg5[%c0_3, %c0_4] : memref<3x128xf32, #tpu.memory_space<vmem>>, vector<3x128xf32>
    %3 = vector.extract_strided_slice %1 {offsets = [0, 0], sizes = [1, 32], strides = [1, 1]} : vector<2x32xf32> to vector<1x32xf32>
    %4 = vector.extract_strided_slice %1 {offsets = [1, 0], sizes = [1, 32], strides = [1, 1]} : vector<2x32xf32> to vector<1x32xf32>
    %5 = vector.extract_strided_slice %2 {offsets = [0, 0], sizes = [1, 128], strides = [1, 1]} : vector<3x128xf32> to vector<1x128xf32>
    %6 = vector.extract_strided_slice %2 {offsets = [1, 0], sizes = [1, 128], strides = [1, 1]} : vector<3x128xf32> to vector<1x128xf32>
    %7 = vector.extract_strided_slice %2 {offsets = [2, 0], sizes = [1, 128], strides = [1, 1]} : vector<3x128xf32> to vector<1x128xf32>
    %8 = arith.truncf %0 : vector<8x32xf32> to vector<8x32xbf16>
    %c0_5 = arith.constant 0 : index
    %c0_6 = arith.constant 0 : index
    %9 = vector.load %arg1[%c0_5, %c0_6] : memref<32x32xbf16, #tpu.memory_space<vmem>>, vector<32x32xbf16>
    %cst = arith.constant dense<0.000000e+00> : vector<8x32xf32>
    %10 = tpu.matmul %8, %9, %cst {dimension_numbers = #tpu.dot_dimension_numbers<[1], [0], [0], [1], [0, 0, 1, 1], [], []>} : vector<8x32xbf16>, vector<32x32xbf16>, vector<8x32xf32> -> vector<8x32xf32>
    %cst_7 = arith.constant dense<0.000000e+00> : vector<32xf32>
    %11 = vector.multi_reduction <add>, %10, %cst_7 [0] : vector<8x32xf32> to vector<32xf32>
    %12 = vector.shape_cast %11 : vector<32xf32> to vector<1x32xf32>
    %cst_8 = arith.constant 1.250000e-01 : f32
    %13 = vector.broadcast %cst_8 : f32 to vector<1x32xf32>
    %14 = arith.mulf %12, %13 : vector<1x32xf32>
    %15 = arith.mulf %10, %10 : vector<8x32xf32>
    %cst_9 = arith.constant dense<0.000000e+00> : vector<32xf32>
    %16 = vector.multi_reduction <add>, %15, %cst_9 [0] : vector<8x32xf32> to vector<32xf32>
    %17 = vector.shape_cast %16 : vector<32xf32> to vector<1x32xf32>
    %cst_10 = arith.constant 1.250000e-01 : f32
    %18 = vector.broadcast %cst_10 : f32 to vector<1x32xf32>
    %19 = arith.mulf %17, %18 : vector<1x32xf32>
    %20 = arith.mulf %14, %14 : vector<1x32xf32>
    %21 = arith.subf %19, %20 : vector<1x32xf32>
    %cst_11 = arith.constant 0.000000e+00 : f32
    %22 = vector.broadcast %cst_11 : f32 to vector<1x32xf32>
    %23 = arith.maximumf %21, %22 : vector<1x32xf32>
    %cst_12 = arith.constant 9.99999974E-6 : f32
    %24 = vector.broadcast %cst_12 : f32 to vector<1x32xf32>
    %25 = arith.addf %23, %24 : vector<1x32xf32>
    %26 = math.rsqrt %25 : vector<1x32xf32>
    %27 = arith.mulf %3, %26 : vector<1x32xf32>
    %28 = arith.mulf %14, %27 : vector<1x32xf32>
    %29 = arith.subf %4, %28 : vector<1x32xf32>
    %30 = vector.broadcast %27 : vector<1x32xf32> to vector<8x32xf32>
    %31 = arith.mulf %10, %30 : vector<8x32xf32>
    %32 = vector.broadcast %29 : vector<1x32xf32> to vector<8x32xf32>
    %33 = arith.addf %31, %32 : vector<8x32xf32>
    %cst_13 = arith.constant 0.000000e+00 : f32
    %34 = vector.broadcast %cst_13 : f32 to vector<8x32xf32>
    %35 = arith.maximumf %33, %34 : vector<8x32xf32>
    %c0_14 = arith.constant 0 : index
    %c0_15 = arith.constant 0 : index
    %36 = vector.load %arg2[%c0_14, %c0_15] : memref<32x128xbf16, #tpu.memory_space<vmem>>, vector<32x128xbf16>
    %cst_16 = arith.constant dense<0.000000e+00> : vector<8x128xf32>
    %37 = tpu.matmul %8, %36, %cst_16 {dimension_numbers = #tpu.dot_dimension_numbers<[1], [0], [0], [1], [0, 0, 1, 1], [], []>} : vector<8x32xbf16>, vector<32x128xbf16>, vector<8x128xf32> -> vector<8x128xf32>
    %38 = arith.truncf %35 : vector<8x32xf32> to vector<8x32xbf16>
    %c0_17 = arith.constant 0 : index
    %c0_18 = arith.constant 0 : index
    %39 = vector.load %arg3[%c0_17, %c0_18] : memref<32x128xbf16, #tpu.memory_space<vmem>>, vector<32x128xbf16>
    %cst_19 = arith.constant dense<0.000000e+00> : vector<8x128xf32>
    %40 = tpu.matmul %38, %39, %cst_19 {dimension_numbers = #tpu.dot_dimension_numbers<[1], [0], [0], [1], [0, 0, 1, 1], [], []>} : vector<8x32xbf16>, vector<32x128xbf16>, vector<8x128xf32> -> vector<8x128xf32>
    %41 = arith.addf %37, %40 : vector<8x128xf32>
    %42 = vector.broadcast %5 : vector<1x128xf32> to vector<8x128xf32>
    %43 = arith.addf %41, %42 : vector<8x128xf32>
    %cst_20 = arith.constant dense<0.000000e+00> : vector<8xf32>
    %44 = vector.multi_reduction <add>, %43, %cst_20 [1] : vector<8x128xf32> to vector<8xf32>
    %45 = vector.shape_cast %44 : vector<8xf32> to vector<8x1xf32>
    %cst_21 = arith.constant 6.250000e-02 : f32
    %46 = vector.broadcast %cst_21 : f32 to vector<8x1xf32>
    %47 = arith.mulf %45, %46 : vector<8x1xf32>
    %48 = arith.mulf %43, %43 : vector<8x128xf32>
    %cst_22 = arith.constant dense<0.000000e+00> : vector<8xf32>
    %49 = vector.multi_reduction <add>, %48, %cst_22 [1] : vector<8x128xf32> to vector<8xf32>
    %50 = vector.shape_cast %49 : vector<8xf32> to vector<8x1xf32>
    %cst_23 = arith.constant 6.250000e-02 : f32
    %51 = vector.broadcast %cst_23 : f32 to vector<8x1xf32>
    %52 = arith.mulf %50, %51 : vector<8x1xf32>
    %53 = arith.mulf %47, %47 : vector<8x1xf32>
    %54 = arith.subf %52, %53 : vector<8x1xf32>
    %cst_24 = arith.constant 0.000000e+00 : f32
    %55 = vector.broadcast %cst_24 : f32 to vector<8x1xf32>
    %56 = arith.maximumf %54, %55 : vector<8x1xf32>
    %57 = vector.broadcast %47 : vector<8x1xf32> to vector<8x128xf32>
    %58 = arith.subf %43, %57 : vector<8x128xf32>
    %cst_25 = arith.constant 9.99999974E-6 : f32
    %59 = vector.broadcast %cst_25 : f32 to vector<8x1xf32>
    %60 = arith.addf %56, %59 : vector<8x1xf32>
    %61 = math.rsqrt %60 : vector<8x1xf32>
    %62 = vector.broadcast %61 : vector<8x1xf32> to vector<8x128xf32>
    %63 = arith.mulf %58, %62 : vector<8x128xf32>
    %64 = vector.broadcast %6 : vector<1x128xf32> to vector<8x128xf32>
    %65 = arith.mulf %63, %64 : vector<8x128xf32>
    %66 = vector.broadcast %7 : vector<1x128xf32> to vector<8x128xf32>
    %67 = arith.addf %65, %66 : vector<8x128xf32>
    %c0_26 = arith.constant 0 : index
    %c0_27 = arith.constant 0 : index
    %68 = vector.load %arg6[%c0_26, %c0_27] : memref<8x128xf32, #tpu.memory_space<vmem>>, vector<8x128xf32>
    tpu.vector_store %arg6[%c0_26, %c0_27], %67 {strides = array<i32>} : memref<8x128xf32, #tpu.memory_space<vmem>>, vector<8x128xf32>,
    return
  }
}

</mosaic_0001>

<llo_original>
// kernel: tpu_custom_call.1
$region0: #{tpu_custom_call.1}
  #allocation0 [shape = 'u32[]', space=smem, size = 0x4, offset = 0x4, fixed_abs, tag = 'smem constant byte address 0x4 - core index']
  #allocation1 [shape = 'u32[144,128]{1,0:T(1,128)}', space=vmem, size = 0x12000, scoped, tag = 'internal scratch']
  %s0 = inlined_call_operand.hbm [shape: f32[8,32], index: 0, kind: input, shape index: {}]
  %s1 = inlined_call_operand.hbm [shape: bf16[32,32], index: 1, kind: input, shape index: {}]
  %s2 = inlined_call_operand.hbm [shape: bf16[32,128], index: 2, kind: input, shape index: {}]
  %s3 = inlined_call_operand.hbm [shape: bf16[32,128], index: 3, kind: input, shape index: {}]
  %s4 = inlined_call_operand.vmem [shape: f32[2,32], index: 4, kind: input, shape index: {}]
  %s5 = inlined_call_operand.vmem [shape: f32[3,128], index: 5, kind: input, shape index: {}]
  %s6 = inlined_call_operand.hbm [shape: f32[8,128], index: 6, kind: output, shape index: {}]
  %s7 = sld [smem:[#allocation0]]
  $region50: #{tpu_custom_call.1} parent=0
    _
  %s9 = ssub.s32 1, %s7
  %s10 = scalar_select 0, %s9, %s7
  $region1: #{tpu_custom_call.1} parent=0
    #allocation2 [shape = 'u8[4096]{0}', space=vmem, size = 0x1000, scoped, tag = 'input window, operand 0, single buffered']
    #allocation3 [shape = 's32[1]{0}', space=sflag, size = 0x4, scoped, tag = 'scoped memory for tpu_custom_call.1']
    #allocation4 [shape = 's32[1]{0}', space=sflag, size = 0x4, scoped, tag = 'scoped memory for tpu_custom_call.1']
    #allocation5 [shape = 'u8[8192]{0}', space=vmem, size = 0x2000, scoped, tag = 'input window, operand 1, single buffered']
    #allocation6 [shape = 's32[1]{0}', space=sflag, size = 0x4, scoped, tag = 'scoped memory for tpu_custom_call.1']
    #allocation7 [shape = 'u8[8192]{0}', space=vmem, size = 0x2000, scoped, tag = 'input window, operand 2, single buffered']
    #allocation8 [shape = 'u8[8192]{0}', space=vmem, size = 0x2000, scoped, tag = 'input window, operand 3, single buffered']
    #allocation9 [shape = 's32[1]{0}', space=sflag, size = 0x4, scoped, tag = 'scoped memory for tpu_custom_call.1']
    #allocation10 [shape = 'u8[4096]{0}', space=vmem, size = 0x1000, scoped, tag = 'output window, operand 0, single buffered']
    %11 = vsyncpa [#allocation3], 0
    %12 = vsyncpa [#allocation6], 0
    %13 = vsyncpa [#allocation9], 0
    %14 = vsyncpa [#allocation4], 0
    // Predicated region
    $region2: #{tpu_custom_call.1} parent=1 // pred_check
      _
    $region3: #{tpu_custom_call.1} parent=1 // pred_check_branch
      %16 = sbr.rel (0) target = $region5
    $region4: #{tpu_custom_call.1} parent=1 // pred_region
      %s18 = ssub.s32 128, 128
      %19 = vsyncadd [#allocation3], %s18
      %s21 = sshll.u32 [#allocation2], 4
      %s22 = int_to_ptr.vmem [resolvable:$true] %s21
      %24 = dma.hbm_to_vmem [thread:$0]  %s0, 128, %s22, [#allocation3]
    $region5: #{tpu_custom_call.1} parent=1 // pred_fallthru
      _
    // Predicated region
    $region6: #{tpu_custom_call.1} parent=1 // pred_check
      _
    $region7: #{tpu_custom_call.1} parent=1 // pred_check_branch
      %26 = sbr.rel (0) target = $region9
    $region8: #{tpu_custom_call.1} parent=1 // pred_region
      %s28 = ssub.s32 256, 256
      %29 = vsyncadd [#allocation6], %s28
      %s30 = sshll.u32 [#allocation5], 4
      %s31 = int_to_ptr.vmem [resolvable:$true] %s30
      %36 = dma.hbm_to_vmem [thread:$0]  %s1, 256, %s31, [#allocation6], 64, 64, 4
    $region9: #{tpu_custom_call.1} parent=1 // pred_fallthru
      _
    // Predicated region
    $region10: #{tpu_custom_call.1} parent=1 // pred_check
      _
    $region11: #{tpu_custom_call.1} parent=1 // pred_check_branch
      %38 = sbr.rel (0) target = $region13
    $region12: #{tpu_custom_call.1} parent=1 // pred_region
      %s40 = ssub.s32 256, 256
      %41 = vsyncadd [#allocation6], %s40
      %s42 = sshll.u32 [#allocation7], 4
      %s43 = int_to_ptr.vmem [resolvable:$true] %s42
      %48 = dma.hbm_to_vmem [thread:$0]  %s2, 256, %s43, [#allocation6], 64, 64, 4
    $region13: #{tpu_custom_call.1} parent=1 // pred_fallthru
      _
    // Predicated region
    $region14: #{tpu_custom_call.1} parent=1 // pred_check
      _
    $region15: #{tpu_custom_call.1} parent=1 // pred_check_branch
      %50 = sbr.rel (0) target = $region17
    $region16: #{tpu_custom_call.1} parent=1 // pred_region
      %s52 = ssub.s32 256, 256
      %53 = vsyncadd [#allocation9], %s52
      %s54 = sshll.u32 [#allocation8], 4
      %s55 = int_to_ptr.vmem [resolvable:$true] %s54
      %60 = dma.hbm_to_vmem [thread:$0]  %s3, 256, %s55, [#allocation9], 64, 64, 4
    $region17: #{tpu_custom_call.1} parent=1 // pred_fallthru
      _
    // Predicated region
    $region18: #{tpu_custom_call.1} parent=1 // pred_check
      _
    $region19: #{tpu_custom_call.1} parent=1 // pred_check_branch
      %62 = sbr.rel (0) target = $region21
    $region20: #{tpu_custom_call.1} parent=1 // pred_region
      _
    $region21: #{tpu_custom_call.1} parent=1 // pred_fallthru
      _
    // Predicated region
    $region22: #{tpu_custom_call.1} parent=1 // pred_check
      _
    $region23: #{tpu_custom_call.1} parent=1 // pred_check_branch
      %64 = sbr.rel (0) target = $region25
    $region24: #{tpu_custom_call.1} parent=1 // pred_region
      _
    $region25: #{tpu_custom_call.1} parent=1 // pred_fallthru
      _
    // Predicated region
    $region26: #{tpu_custom_call.1} parent=1 // pred_check
      _
    $region27: #{tpu_custom_call.1} parent=1 // pred_check_branch
      %66 = sbr.rel (0) target = $region29
    $region28: #{tpu_custom_call.1} parent=1 // pred_region
      %67 = dma.done [#allocation3], 128
    $region29: #{tpu_custom_call.1} parent=1 // pred_fallthru
      _
    // Predicated region
    $region30: #{tpu_custom_call.1} parent=1 // pred_check
      _
    $region31: #{tpu_custom_call.1} parent=1 // pred_check_branch
      %69 = sbr.rel (0) target = $region33
    $region32: #{tpu_custom_call.1} parent=1 // pred_region
      %70 = dma.done [#allocation6], 256
    $region33: #{tpu_custom_call.1} parent=1 // pred_fallthru
      _
    // Predicated region
    $region34: #{tpu_custom_call.1} parent=1 // pred_check
      _
    $region35: #{tpu_custom_call.1} parent=1 // pred_check_branch
      %72 = sbr.rel (0) target = $region37
    $region36: #{tpu_custom_call.1} parent=1 // pred_region
      %73 = dma.done [#allocation6], 256
    $region37: #{tpu_custom_call.1} parent=1 // pred_fallthru
      _
    // Predicated region
    $region38: #{tpu_custom_call.1} parent=1 // pred_check
      _
    $region39: #{tpu_custom_call.1} parent=1 // pred_check_branch
      %75 = sbr.rel (0) target = $region41
    $region40: #{tpu_custom_call.1} parent=1 // pred_region
      %76 = dma.done [#allocation9], 256
    $region41: #{tpu_custom_call.1} parent=1 // pred_fallthru
      _
    %v78 = vld [vmem:[#allocation2] sm:$0xff]
    %v79 = vld [vmem:[%s4] sm:$0x3]
    %v80 = vld [vmem:[%s5] sm:$0x7]
    %v81 = vpack.c.bf16 %v78, %v78
    %v82 = vld [vmem:[#allocation5] sm:$0xf]
    %v83 = vld [vmem:[#allocation5 + $0x4] sm:$0xf]
    %v84 = vld [vmem:[#allocation5 + $0x8] sm:$0xf]
    %v85 = vld [vmem:[#allocation5 + $0xc] sm:$0xf]
    %v90 = vunpack.c.l.b16 %v82
    %v91 = vunpack.c.l.b16 %v83
    %v92 = vunpack.c.l.b16 %v84
    %v93 = vunpack.c.l.b16 %v85
    %v94 = vpack.c.b16 %v91, %v90
    %v95 = vpack.c.b16 %v93, %v92
    %vm98 = vcmask 261120
    %v100 = vsel %vm98, %v81, 0
    %102 = vmatprep.subr.bf16.mxu0 0
    %103 = vmatpush1.bf16.msra.mxu0 %v94
    %104 = vmatprep.subr.bf16.mxu0 0
    %105 = vmatpush1.bf16.msra.mxu0 %v95
    %106 = vmatprep.subr.bf16.mxu0 0
    %107 = vmatpush1.bf16.msra.mxu0 0
    %108 = vmatprep.subr.bf16.mxu0 0
    %109 = vmatpush1.bf16.msra.mxu0 0
    %110 = vmatprep.subr.bf16.mxu0 0
    %111 = vmatpush1.bf16.msra.mxu0 0
    %112 = vmatprep.subr.bf16.mxu0 0
    %113 = vmatpush1.bf16.msra.mxu0 0
    %114 = vmatprep.subr.bf16.mxu0 0
    %115 = vmatpush1.bf16.msra.mxu0 0
    %116 = vmatprep.subr.bf16.mxu0 0
    %117 = vmatpush1.bf16.msra.mxu0 0
    %118 = vmatprep.subr.bf16.mxu0 0
    %119 = vmatpush1.bf16.msra.mxu0 0
    %120 = vmatprep.subr.bf16.mxu0 0
    %121 = vmatpush1.bf16.msra.mxu0 0
    %122 = vmatprep.subr.bf16.mxu0 0
    %123 = vmatpush1.bf16.msra.mxu0 0
    %124 = vmatprep.subr.bf16.mxu0 0
    %125 = vmatpush1.bf16.msra.mxu0 0
    %126 = vmatprep.subr.bf16.mxu0 0
    %127 = vmatpush1.bf16.msra.mxu0 0
    %128 = vmatprep.subr.bf16.mxu0 0
    %129 = vmatpush1.bf16.msra.mxu0 0
    %130 = vmatprep.subr.bf16.mxu0 0
    %131 = vmatpush1.bf16.msra.mxu0 0
    %132 = vmatprep.subr.bf16.mxu0 0
    %133 = vmatpush1.bf16.msra.mxu0 0
    %134 = vmatprep.mubr.bf16.mxu0 0
    %135 = vmatmul.mubr.bf16.gmra.mrb[0].mxu0 %v100
    %v136 = vpop.f32.mrb[0].mxu0
    %v137 = vadd.f32 0.0, %v136
    %v138 = vpop.f32.mrb[0].mxu0
    %v139 = vpop.f32.mrb[0].mxu0
    %v140 = vpop.f32.mrb[0].mxu0
    %141 = vdwg.mxu0
    %v142 = vsel %vm98, %v137, 0.0
    %v143 = vrot.slane %v142, 4
    %v144 = vadd.f32 %v142, %v143
    %v145 = vrot.slane %v144, 2
    %v146 = vadd.f32 %v144, %v145
    %v147 = vrot.slane %v146, 1
    %v148 = vadd.f32 %v146, %v147
    %v149 = vmul.f32 %v148, 0.125
    %v150 = vmul.f32 %v137, %v137
    %v151 = vsel %vm98, %v150, 0.0
    %v152 = vrot.slane %v151, 4
    %v153 = vadd.f32 %v151, %v152
    %v154 = vrot.slane %v153, 2
    %v155 = vadd.f32 %v153, %v154
    %v156 = vrot.slane %v155, 1
    %v157 = vadd.f32 %v155, %v156
    %v158 = vmul.f32 %v157, 0.125
    %v159 = vmul.f32 %v149, %v149
    %v160 = vsub.f32 %v158, %v159
    %v161 = vmax.f32 %v160, 0.0
    %v162 = vadd.f32 %v161, 1e-05
    %v163 = vrsqrt.pop %v162
    %v164 = vmul.f32 %v79, %v163
    %v165 = vmul.f32 %v149, %v164
    %v167 = vrot.slane %v165, 7
    %v169 = vsub.f32 %v79, %v167
    %v170 = vlaneseq
    %v171 = vshrl.u32 %v170, 7
    %v172 = vsub.s32 0, %v171
    %v173 = vrot.slane %v164, %v172
    %v174 = vmul.f32 %v137, %v173
    %v175 = vlaneseq
    %v176 = vshrl.u32 %v175, 7
    %v177 = vsub.s32 1, %v176
    %v178 = vrot.slane %v169, %v177
    %v179 = vadd.f32 %v174, %v178
    %v180 = vmax.f32 %v179, 0.0
    %v181 = vld [vmem:[#allocation7] sm:$0xf]
    %v182 = vld [vmem:[#allocation7 + $0x4] sm:$0xf]
    %v183 = vld [vmem:[#allocation7 + $0x8] sm:$0xf]
    %v184 = vld [vmem:[#allocation7 + $0xc] sm:$0xf]
    %v185 = vpack.c.bf16 %v180, %v180
    %v186 = vld [vmem:[#allocation8] sm:$0xf]
    %v187 = vld [vmem:[#allocation8 + $0x4] sm:$0xf]
    %v188 = vld [vmem:[#allocation8 + $0x8] sm:$0xf]
    %v189 = vld [vmem:[#allocation8 + $0xc] sm:$0xf]
    %v194 = vunpack.c.l.b16 %v186
    %v195 = vunpack.c.l.b16 %v187
    %v196 = vunpack.c.l.b16 %v188
    %v197 = vunpack.c.l.b16 %v189
    %v198 = vpack.c.b16 %v195, %v194
    %v199 = vpack.c.b16 %v197, %v196
    %v203 = vsel %vm98, %v185, 0
    %205 = vmatprep.subr.bf16.mxu0 0
    %206 = vmatpush1.bf16.msra.mxu0 %v198
    %207 = vmatprep.subr.bf16.mxu0 0
    %208 = vmatpush1.bf16.msra.mxu0 %v199
    %209 = vmatprep.subr.bf16.mxu0 0
    %210 = vmatpush1.bf16.msra.mxu0 0
    %211 = vmatprep.subr.bf16.mxu0 0
    %212 = vmatpush1.bf16.msra.mxu0 0
    %213 = vmatprep.subr.bf16.mxu0 0
    %214 = vmatpush1.bf16.msra.mxu0 0
    %215 = vmatprep.subr.bf16.mxu0 0
    %216 = vmatpush1.bf16.msra.mxu0 0
    %217 = vmatprep.subr.bf16.mxu0 0
    %218 = vmatpush1.bf16.msra.mxu0 0
    %219 = vmatprep.subr.bf16.mxu0 0
    %220 = vmatpush1.bf16.msra.mxu0 0
    %221 = vmatprep.subr.bf16.mxu0 0
    %222 = vmatpush1.bf16.msra.mxu0 0
    %223 = vmatprep.subr.bf16.mxu0 0
    %224 = vmatpush1.bf16.msra.mxu0 0
    %225 = vmatprep.subr.bf16.mxu0 0
    %226 = vmatpush1.bf16.msra.mxu0 0
    %227 = vmatprep.subr.bf16.mxu0 0
    %228 = vmatpush1.bf16.msra.mxu0 0
    %229 = vmatprep.subr.bf16.mxu0 0
    %230 = vmatpush1.bf16.msra.mxu0 0
    %231 = vmatprep.subr.bf16.mxu0 0
    %232 = vmatpush1.bf16.msra.mxu0 0
    %233 = vmatprep.subr.bf16.mxu0 0
    %234 = vmatpush1.bf16.msra.mxu0 0
    %235 = vmatprep.subr.bf16.mxu0 0
    %236 = vmatpush1.bf16.msra.mxu0 0
    %237 = vmatprep.mubr.bf16.mxu0 0
    %238 = vmatmul.mubr.bf16.gmra.mrb[0].mxu0 %v203
    %v239 = vpop.f32.mrb[0].mxu0
    %v240 = vadd.f32 0.0, %v239
    %v241 = vpop.f32.mrb[0].mxu0
    %v242 = vpop.f32.mrb[0].mxu0
    %v243 = vpop.f32.mrb[0].mxu0
    %244 = vdwg.mxu0
    %v249 = vunpack.c.l.b16 %v181
    %v250 = vunpack.c.l.b16 %v182
    %v251 = vunpack.c.l.b16 %v183
    %v252 = vunpack.c.l.b16 %v184
    %v253 = vpack.c.b16 %v250, %v249
    %v254 = vpack.c.b16 %v252, %v251
    %257 = vmatprep.subr.bf16.mxu0 0
    %258 = vmatpush1.bf16.msra.mxu0 %v253
    %259 = vmatprep.subr.bf16.mxu0 0
    %260 = vmatpush1.bf16.msra.mxu0 %v254
    %261 = vmatprep.subr.bf16.mxu0 0
    %262 = vmatpush1.bf16.msra.mxu0 0
    %263 = vmatprep.subr.bf16.mxu0 0
    %264 = vmatpush1.bf16.msra.mxu0 0
    %265 = vmatprep.subr.bf16.mxu0 0
    %266 = vmatpush1.bf16.msra.mxu0 0
    %267 = vmatprep.subr.bf16.mxu0 0
    %268 = vmatpush1.bf16.msra.mxu0 0
    %269 = vmatprep.subr.bf16.mxu0 0
    %270 = vmatpush1.bf16.msra.mxu0 0
    %271 = vmatprep.subr.bf16.mxu0 0
    %272 = vmatpush1.bf16.msra.mxu0 0
    %273 = vmatprep.subr.bf16.mxu0 0
    %274 = vmatpush1.bf16.msra.mxu0 0
    %275 = vmatprep.subr.bf16.mxu0 0
    %276 = vmatpush1.bf16.msra.mxu0 0
    %277 = vmatprep.subr.bf16.mxu0 0
    %278 = vmatpush1.bf16.msra.mxu0 0
    %279 = vmatprep.subr.bf16.mxu0 0
    %280 = vmatpush1.bf16.msra.mxu0 0
    %281 = vmatprep.subr.bf16.mxu0 0
    %282 = vmatpush1.bf16.msra.mxu0 0
    %283 = vmatprep.subr.bf16.mxu0 0
    %284 = vmatpush1.bf16.msra.mxu0 0
    %285 = vmatprep.subr.bf16.mxu0 0
    %286 = vmatpush1.bf16.msra.mxu0 0
    %287 = vmatprep.subr.bf16.mxu0 0
    %288 = vmatpush1.bf16.msra.mxu0 0
    %289 = vmatprep.mubr.bf16.mxu0 0
    %290 = vmatmul.mubr.bf16.gmra.mrb[0].mxu0 %v100
    %v291 = vpop.f32.mrb[0].mxu0
    %v292 = vadd.f32 %v240, %v291
    %v293 = vpop.f32.mrb[0].mxu0
    %v294 = vpop.f32.mrb[0].mxu0
    %v295 = vpop.f32.mrb[0].mxu0
    %296 = vdwg.mxu0
    %v297 = vlaneseq
    %v298 = vshrl.u32 %v297, 7
    %v299 = vsub.s32 0, %v298
    %v300 = vrot.slane %v80, %v299
    %v301 = vadd.f32 %v292, %v300
    %302 = vadd.xlane.f32.xlu0 %v301
    %v303 = vpop.xlane.xlu0 %302
    %v304 = vmul.f32 %v303, 0.0625
    %v305 = vmul.f32 %v301, %v301
    %306 = vadd.xlane.f32.xlu0 %v305
    %v307 = vpop.xlane.xlu0 %306
    %v308 = vmul.f32 %v307, 0.0625
    %v309 = vmul.f32 %v304, %v304
    %v310 = vsub.f32 %v308, %v309
    %v311 = vmax.f32 %v310, 0.0
    %v312 = vsub.f32 %v301, %v304
    %v313 = vadd.f32 %v311, 1e-05
    %v314 = vrsqrt.pop %v313
    %v315 = vmul.f32 %v312, %v314
    %v316 = vlaneseq
    %v317 = vshrl.u32 %v316, 7
    %v318 = vsub.s32 1, %v317
    %v319 = vrot.slane %v80, %v318
    %v320 = vmul.f32 %v315, %v319
    %v321 = vlaneseq
    %v322 = vshrl.u32 %v321, 7
    %v323 = vsub.s32 2, %v322
    %v324 = vrot.slane %v80, %v323
    %v325 = vadd.f32 %v320, %v324
    %326 = vst [vmem:[#allocation10] sm:$0xff] %v325
    // Predicated region
    $region42: #{tpu_custom_call.1} parent=1 // pred_check
      _
    $region43: #{tpu_custom_call.1} parent=1 // pred_check_branch
      %328 = sbr.rel (0) target = $region45
    $region44: #{tpu_custom_call.1} parent=1 // pred_region
      %s330 = ssub.s32 128, 128
      %331 = vsyncadd [#allocation4], %s330
      %s333 = sshll.u32 [#allocation10], 4
      %s334 = int_to_ptr.vmem [resolvable:$true] %s333
      %336 = dma.vmem_to_hbm [thread:$0]  %s334, 128, %s6, [#allocation4]
    $region45: #{tpu_custom_call.1} parent=1 // pred_fallthru
      _
    // Predicated region
    $region46: #{tpu_custom_call.1} parent=1 // pred_check
      _
    $region47: #{tpu_custom_call.1} parent=1 // pred_check_branch
      %338 = sbr.rel (0) target = $region49
    $region48: #{tpu_custom_call.1} parent=1 // pred_region
      %339 = dma.done [#allocation4], 128
    $region49: #{tpu_custom_call.1} parent=1 // pred_fallthru
      _
    %340 = vsyncpa [#allocation3], 1
    %341 = vsyncpa [#allocation6], 1
    %342 = vsyncpa [#allocation9], 1
    %343 = vsyncpa [#allocation4], 1

</llo_original>
